<compile_context>
chip_gen: v5e
topology: v5e:2x2
jax: 0.10.0
libtpu: 0.0.40
codegen_flags: <defaults>
</compile_context>

<pallas_src>
import numpy as np
import jax
import jax.numpy as jnp
from jax.experimental import pallas as pl
from jax.experimental.pallas import tpu as pltpu

# ----------------------------- model config ---------------------------------
B = 8                    # batch size (== target_dim per the module's __init__)
K = 1                    # feature dim (squeezed everywhere in calc_loss)
L = 16                   # length of observed_data last axis
COND_DIM = L - 4         # cond_dim so cond_obs + mapping_noise(...) adds
NUM_STEPS = 4            # diffusion steps
EMB_DIM = 16             # surrogate diffusion-step embedding dim
HID = 32                 # surrogate diffmodel hidden dim
BETA_START, BETA_END = 1e-4, 0.5   # 'quad' schedule

N_SAMPLES = 512          # (t, noise) draws evaluated per pallas_call


def _pick_grid(n_samples):
    """Grid sizing per review: collapse to 1 step on single-TC chips
    (v5e/v6e); split 2-way only on dual-TensorCore v7x with >=256
    samples per step so each TC gets real work."""
    try:
        kind = jax.devices()[0].device_kind.lower()
    except Exception:
        kind = ""
    grid = 2 if ("v7" in kind and n_samples >= 256) else 1
    sb = n_samples // grid
    assert sb % 128 == 0 and sb * grid == n_samples
    return grid, sb


# ------------------------------- Pallas kernel -------------------------------
def csdi_loss_kernel(pre_ref, nmb_ref, gsc_ref, wo_ref, out_ref):
    # pre_ref: (B, HID, SB)  folded hidden pre-activation (samples on lanes)
    # nmb_ref: (2, B, SB)    noise_j - bout_j
    # gsc_ref: (2, B, 1)     target_mask_j * sqrt(scale)   (VMEM-resident)
    # wo_ref : (2, HID, 1)   wout columns                   (VMEM-resident)
    h = jnp.maximum(pre_ref[...], 0.0)                      # relu, (B, HID, SB)
    wo = wo_ref[...]                                        # (2, HID, 1)

    # output projection as two sublane (HID) reductions -- no tiny-N MXU pass
    d0 = jnp.sum(h * wo[0], axis=1)                         # (B, SB)
    d1 = jnp.sum(h * wo[1], axis=1)                         # (B, SB)

    nmb = nmb_ref[...]                                      # (2, B, SB)
    g = gsc_ref[...]                                        # (2, B, 1)
    r0 = (nmb[0] - d0) * g[0]                               # masked residuals
    r1 = (nmb[1] - d1) * g[1]

    # per-sample loss = scale * sum_b sum_j residual^2  (scale folded into g)
    out_ref[...] = jnp.sum(r0 * r0 + r1 * r1, axis=0, keepdims=True)  # (1, SB)


def csdi_forward_losses(pre, nmb, gsc, wo):
    n = pre.shape[-1]
    grid, sb = _pick_grid(n)
    return pl.pallas_call(
        csdi_loss_kernel,
        out_shape=jax.ShapeDtypeStruct((1, n), jnp.float32),
        grid=(grid,),
        in_specs=[
            pl.BlockSpec((B, HID, sb), lambda g: (0, 0, g)),   # slides on lanes
            pl.BlockSpec((2, B, sb), lambda g: (0, 0, g)),     # slides on lanes
            pl.BlockSpec((2, B, 1), lambda g: (0, 0, 0)),      # resident
            pl.BlockSpec((2, HID, 1), lambda g: (0, 0, 0)),    # resident
        ],
        out_specs=pl.BlockSpec((1, sb), lambda g: (0, g)),     # lane-major out
        compiler_params=pltpu.CompilerParams(
            dimension_semantics=("parallel",)),
    )(pre, nmb, gsc, wo)


# --------------------------- host-side folding / packing ---------------------
def fold_and_pack(params, observed_data, gt_mask, ps, alpha, t_all, noise_all):
    """All sample-independent math + per-sample affine folding (layout
    plumbing + a couple of tiny einsums, amortized over the whole call)."""
    obs = observed_data[:, 0, :]                               # (B, L)
    gt = gt_mask[:, 0, :]                                      # (B, L)
    cond_obs = jnp.concatenate([obs[:, 0:1], obs[:, 5:]], axis=1)  # (B, COND_DIM)

    # weight folding
    w12 = params["w1"] + params["w2"]                          # (COND_DIM, HID)
    wmw1 = params["wmap"] @ params["w1"]                       # (2, HID)
    bfold = params["b1"] + params["bmap"] @ params["w1"]       # (1, HID)
    twt = params["emb"] @ params["wt"]                         # (NUM_STEPS, HID)

    # sample-independent hidden pre-activation (hoisted out of the kernel)
    cw = cond_obs @ w12 + bfold                                # (B, HID)

    # IPW scale (hoisted out of the kernel); folded via sqrt into the mask
    t_batch = obs[:, 0]
    weights = jnp.clip(t_batch / ps[:, 0] + (1.0 - t_batch) / (1.0 - ps[:, 0]),
                       0.1, 0.9)
    gt13 = gt[:, 1:3]                                          # target_mask (train)
    num_eval = jnp.sum(gt13)
    scale = jnp.sum(weights) / jnp.where(num_eval > 0, num_eval, 1.0)
    sqrt_scale = jnp.sqrt(scale)

    # per-sample folding: noisy data + full hidden pre-activation
    a = alpha[t_all]                                           # (N, B)
    noisy = (jnp.sqrt(a)[..., None] * obs[None, :, 1:3]
             + jnp.sqrt(1.0 - a)[..., None] * noise_all)       # (N, B, 2)
    pre = cw[None, :, :] + twt[t_all] + jnp.einsum('nbj,jh->nbh', noisy, wmw1)

    # lane-dense layouts: sample axis last (lanes)
    pre_ld = jnp.transpose(pre, (1, 2, 0))                     # (B, HID, N)
    nmb = jnp.transpose(noise_all - params["bout"][0][None, None, :], (2, 1, 0))
    gsc = (gt13 * sqrt_scale).T[:, :, None]                    # (2, B, 1)
    wo = params["wout"].T[:, :, None]                          # (2, HID, 1)
    return (pre_ld.astype(jnp.float32), nmb.astype(jnp.float32),
            gsc.astype(jnp.float32), wo.astype(jnp.float32))


@jax.jit
def csdi_forward_batched(params, observed_data, gt_mask, ps, alpha, t_all, noise_all):
    pre, nmb, gsc, wo = fold_and_pack(params, observed_data, gt_mask, ps,
                                      alpha, t_all, noise_all)
    losses = csdi_forward_losses(pre, nmb, gsc, wo)            # (1, N)
    return losses[0]                                           # (N,)


# ----------------------------- pure-JAX reference ----------------------------
def reference_loss(obs3d, gt3d, ps2d, noise3d, t, params, alpha):
    """Unfolded original formulation of calc_loss (is_train=1 path)."""
    Bx, Kx, Lx = obs3d.shape
    cond_mask = gt3d.at[:, :, 1].set(0.0).at[:, :, 2].set(0.0)   # forward(), is_train=1
    current_alpha = alpha[t].reshape(Bx, 1, 1)
    noisy_data = current_alpha ** 0.5 * obs3d[:, :, 1:3] + (1.0 - current_alpha) ** 0.5 * noise3d
    a = obs3d[:, :, 0:1]
    x = obs3d[:, :, 5:]
    cond_obs = jnp.concatenate([a, x], axis=2)
    noisy_target = noisy_data @ params["wmap"] + params["bmap"]
    diff_input = cond_obs + noisy_target
    temb = jax.nn.one_hot(t, NUM_STEPS, dtype=jnp.float32) @ params["emb"]
    h = (diff_input[:, 0, :] @ params["w1"] + cond_obs[:, 0, :] @ params["w2"]
         + temb @ params["wt"] + params["b1"])
    h = jnp.maximum(h, 0.0)
    predicted = h @ params["wout"] + params["bout"]              # (B, 2)
    target_mask = (gt3d - cond_mask)[:, 0, 1:3]
    noise = noise3d[:, 0, :]
    residual = (noise - predicted) * target_mask
    num_eval = target_mask.sum()
    t_batch = obs3d[:, :, 0].squeeze()
    weights = t_batch / ps2d[:, 0] + (1.0 - t_batch) / (1.0 - ps2d[:, 0])
    weights = jnp.clip(weights.reshape(-1, 1, 1), 0.1, 0.9)
    loss = (weights * residual ** 2).sum() / jnp.where(num_eval > 0, num_eval, 1.0)
    return loss


# ---------------------------------- main -------------------------------------
if __name__ == "__main__":
    key = jax.random.PRNGKey(0)
    keys = jax.random.split(key, 12)

    # diffusion schedule ('quad'), matching __init__
    beta = np.linspace(BETA_START ** 0.5, BETA_END ** 0.5, NUM_STEPS) ** 2
    alpha_hat = 1.0 - beta
    alpha = jnp.asarray(np.cumprod(alpha_hat), dtype=jnp.float32)

    # deterministic parameters
    params = {
        "wmap": 0.2 * jax.random.normal(keys[0], (2, COND_DIM), jnp.float32),
        "bmap": 0.1 * jax.random.normal(keys[1], (1, COND_DIM), jnp.float32),
        "emb":  0.2 * jax.random.normal(keys[2], (NUM_STEPS, EMB_DIM), jnp.float32),
        "w1":   0.2 * jax.random.normal(keys[3], (COND_DIM, HID), jnp.float32),
        "w2":   0.2 * jax.random.normal(keys[4], (COND_DIM, HID), jnp.float32),
        "wt":   0.2 * jax.random.normal(keys[5], (EMB_DIM, HID), jnp.float32),
        "b1":   0.1 * jax.random.normal(keys[6], (1, HID), jnp.float32),
        "wout": 0.2 * jax.random.normal(keys[7], (HID, 2), jnp.float32),
        "bout": 0.1 * jax.random.normal(keys[8], (1, 2), jnp.float32),
    }

    # batch inputs (what process_data would produce)
    observed_data = jax.random.normal(keys[9], (B, K, L), jnp.float32)
    treat = jax.random.bernoulli(keys[10], 0.5, (B, K)).astype(jnp.float32)
    observed_data = observed_data.at[:, :, 0].set(treat)       # treatment indicator
    gt_mask = jax.random.bernoulli(keys[11], 0.5, (B, K, L)).astype(jnp.float32)
    ps = jax.random.uniform(jax.random.fold_in(key, 1), (B, 1), jnp.float32, 0.2, 0.8)

    # N_SAMPLES independent (t, noise) draws batched per pallas_call;
    # draw 0 is the randomness of the forward() call itself.
    t_all = jax.random.randint(jax.random.fold_in(key, 2), (N_SAMPLES, B), 0, NUM_STEPS)
    noise_all = jax.random.normal(jax.random.fold_in(key, 3),
                                  (N_SAMPLES, B, K, 2), jnp.float32)

    losses = jax.block_until_ready(
        csdi_forward_batched(params, observed_data, gt_mask, ps, alpha,
                             t_all, noise_all[:, :, 0, :]))     # (N_SAMPLES,)
    forward_loss = losses[0]   # == CSDI_base.forward(batch, is_train=1) output

    # reference: unfolded original math, checked for every sample
    ref_losses = jax.block_until_ready(jax.vmap(
        lambda tt, nz: reference_loss(observed_data, gt_mask, ps, nz, tt, params, alpha)
    )(t_all, noise_all))

    np.testing.assert_allclose(np.asarray(losses), np.asarray(ref_losses),
                               rtol=5e-3, atol=5e-3)
    np.testing.assert_allclose(np.asarray(forward_loss), np.asarray(ref_losses[0]),
                               rtol=5e-3, atol=5e-3)
    print("KERNEL_OK")
</pallas_src>

<mosaic_0001>
module attributes {stable_mosaic.version = 11 : i64} {
  func.func @csdi_loss_kernel(%arg0: i32, %arg1: memref<8x32x512xf32, #tpu.memory_space<vmem>>, %arg2: memref<2x8x512xf32, #tpu.memory_space<vmem>>, %arg3: memref<2x8x1xf32, #tpu.memory_space<vmem>>, %arg4: memref<2x32x1xf32, #tpu.memory_space<vmem>>, %arg5: memref<1x512xf32, #tpu.memory_space<vmem>>) attributes {dimension_semantics = [#tpu.dimension_semantics<parallel>], iteration_bounds = array<i64: 1>, scalar_prefetch = 0 : i64, scratch_operands = 0 : i64, tpu.core_type = #tpu.core_type<tc>, window_params = [{transform_indices = @transform_0, window_bounds = array<i64: 8, 32, 512>}, {transform_indices = @transform_1, window_bounds = array<i64: 2, 8, 512>}, {pipeline_mode = #tpu.pipeline_mode<synchronous>, transform_indices = @transform_2, window_bounds = array<i64: 2, 8, 1>}, {pipeline_mode = #tpu.pipeline_mode<synchronous>, transform_indices = @transform_3, window_bounds = array<i64: 2, 32, 1>}, {transform_indices = @transform_4, window_bounds = array<i64: 1, 512>}]} {
    %c0 = arith.constant 0 : index
    %c0_0 = arith.constant 0 : index
    %c0_1 = arith.constant 0 : index
    %0 = vector.load %arg1[%c0, %c0_0, %c0_1] : memref<8x32x512xf32, #tpu.memory_space<vmem>>, vector<8x32x512xf32>
    %cst = arith.constant 0.000000e+00 : f32
    %1 = vector.broadcast %cst : f32 to vector<8x32x512xf32>
    %2 = arith.maximumf %0, %1 : vector<8x32x512xf32>
    %c0_2 = arith.constant 0 : index
    %c0_3 = arith.constant 0 : index
    %c0_4 = arith.constant 0 : index
    %3 = vector.load %arg4[%c0_2, %c0_3, %c0_4] : memref<2x32x1xf32, #tpu.memory_space<vmem>>, vector<2x32x1xf32>
    %4 = vector.extract_strided_slice %3 {offsets = [0, 0, 0], sizes = [1, 32, 1], strides = [1, 1, 1]} : vector<2x32x1xf32> to vector<1x32x1xf32>
    %5 = vector.shape_cast %4 : vector<1x32x1xf32> to vector<32x1xf32>
    %6 = vector.shape_cast %5 : vector<32x1xf32> to vector<1x32x1xf32>
    %7 = vector.broadcast %6 : vector<1x32x1xf32> to vector<8x32x512xf32>
    %8 = arith.mulf %2, %7 : vector<8x32x512xf32>
    %cst_5 = arith.constant dense<0.000000e+00> : vector<8x512xf32>
    %9 = vector.multi_reduction <add>, %8, %cst_5 [1] : vector<8x32x512xf32> to vector<8x512xf32>
    %10 = vector.extract_strided_slice %3 {offsets = [1, 0, 0], sizes = [1, 32, 1], strides = [1, 1, 1]} : vector<2x32x1xf32> to vector<1x32x1xf32>
    %11 = vector.shape_cast %10 : vector<1x32x1xf32> to vector<32x1xf32>
    %12 = vector.shape_cast %11 : vector<32x1xf32> to vector<1x32x1xf32>
    %13 = vector.broadcast %12 : vector<1x32x1xf32> to vector<8x32x512xf32>
    %14 = arith.mulf %2, %13 : vector<8x32x512xf32>
    %cst_6 = arith.constant dense<0.000000e+00> : vector<8x512xf32>
    %15 = vector.multi_reduction <add>, %14, %cst_6 [1] : vector<8x32x512xf32> to vector<8x512xf32>
    %c0_7 = arith.constant 0 : index
    %c0_8 = arith.constant 0 : index
    %c0_9 = arith.constant 0 : index
    %16 = vector.load %arg2[%c0_7, %c0_8, %c0_9] : memref<2x8x512xf32, #tpu.memory_space<vmem>>, vector<2x8x512xf32>
    %c0_10 = arith.constant 0 : index
    %c0_11 = arith.constant 0 : index
    %c0_12 = arith.constant 0 : index
    %17 = vector.load %arg3[%c0_10, %c0_11, %c0_12] : memref<2x8x1xf32, #tpu.memory_space<vmem>>, vector<2x8x1xf32>
    %18 = vector.extract_strided_slice %16 {offsets = [0, 0, 0], sizes = [1, 8, 512], strides = [1, 1, 1]} : vector<2x8x512xf32> to vector<1x8x512xf32>
    %19 = vector.shape_cast %18 : vector<1x8x512xf32> to vector<8x512xf32>
    %20 = arith.subf %19, %9 : vector<8x512xf32>
    %21 = vector.extract_strided_slice %17 {offsets = [0, 0, 0], sizes = [1, 8, 1], strides = [1, 1, 1]} : vector<2x8x1xf32> to vector<1x8x1xf32>
    %22 = vector.shape_cast %21 : vector<1x8x1xf32> to vector<8x1xf32>
    %23 = vector.broadcast %22 : vector<8x1xf32> to vector<8x512xf32>
    %24 = arith.mulf %20, %23 : vector<8x512xf32>
    %25 = vector.extract_strided_slice %16 {offsets = [1, 0, 0], sizes = [1, 8, 512], strides = [1, 1, 1]} : vector<2x8x512xf32> to vector<1x8x512xf32>
    %26 = vector.shape_cast %25 : vector<1x8x512xf32> to vector<8x512xf32>
    %27 = arith.subf %26, %15 : vector<8x512xf32>
    %28 = vector.extract_strided_slice %17 {offsets = [1, 0, 0], sizes = [1, 8, 1], strides = [1, 1, 1]} : vector<2x8x1xf32> to vector<1x8x1xf32>
    %29 = vector.shape_cast %28 : vector<1x8x1xf32> to vector<8x1xf32>
    %30 = vector.broadcast %29 : vector<8x1xf32> to vector<8x512xf32>
    %31 = arith.mulf %27, %30 : vector<8x512xf32>
    %32 = arith.mulf %24, %24 : vector<8x512xf32>
    %33 = arith.mulf %31, %31 : vector<8x512xf32>
    %34 = arith.addf %32, %33 : vector<8x512xf32>
    %cst_13 = arith.constant dense<0.000000e+00> : vector<512xf32>
    %35 = vector.multi_reduction <add>, %34, %cst_13 [0] : vector<8x512xf32> to vector<512xf32>
    %36 = vector.shape_cast %35 : vector<512xf32> to vector<1x512xf32>
    %c0_14 = arith.constant 0 : index
    %c0_15 = arith.constant 0 : index
    %37 = vector.load %arg5[%c0_14, %c0_15] : memref<1x512xf32, #tpu.memory_space<vmem>>, vector<1x512xf32>
    tpu.vector_store %arg5[%c0_14, %c0_15], %36 {strides = array<i32>} : memref<1x512xf32, #tpu.memory_space<vmem>>, vector<1x512xf32>,
    return
  }
  func.func @transform_0(%arg0: i32) -> (i32, i32, i32) {
    %c0_i32 = arith.constant 0 : i32
    %c0_i32_0 = arith.constant 0 : i32
    %c0_i32_1 = arith.constant 0 : i32
    return %c0_i32, %c0_i32_0, %arg0 : i32, i32, i32
  }
  func.func @transform_1(%arg0: i32) -> (i32, i32, i32) {
    %c0_i32 = arith.constant 0 : i32
    %c0_i32_0 = arith.constant 0 : i32
    %c0_i32_1 = arith.constant 0 : i32
    return %c0_i32, %c0_i32_0, %arg0 : i32, i32, i32
  }
  func.func @transform_2(%arg0: i32) -> (i32, i32, i32) {
    %c0_i32 = arith.constant 0 : i32
    %c0_i32_0 = arith.constant 0 : i32
    %c0_i32_1 = arith.constant 0 : i32
    %c0_i32_2 = arith.constant 0 : i32
    return %c0_i32, %c0_i32_0, %c0_i32_1 : i32, i32, i32
  }
  func.func @transform_3(%arg0: i32) -> (i32, i32, i32) {
    %c0_i32 = arith.constant 0 : i32
    %c0_i32_0 = arith.constant 0 : i32
    %c0_i32_1 = arith.constant 0 : i32
    %c0_i32_2 = arith.constant 0 : i32
    return %c0_i32, %c0_i32_0, %c0_i32_1 : i32, i32, i32
  }
  func.func @transform_4(%arg0: i32) -> (i32, i32) {
    %c0_i32 = arith.constant 0 : i32
    %c0_i32_0 = arith.constant 0 : i32
    return %c0_i32, %arg0 : i32, i32
  }
}

</mosaic_0001>

<llo_original>
// kernel: csdi_forward_batched.1
$region0: #{csdi_forward_batched.1}
  #allocation0 [shape = 'u32[]', space=smem, size = 0x4, offset = 0x4, fixed_abs, tag = 'smem constant byte address 0x4 - core index']
  #allocation1 [shape = 'u32[72,128]{1,0:T(1,128)}', space=vmem, size = 0x9000, scoped, tag = 'internal scratch']
  %s0 = inlined_call_operand.vmem [shape: f32[8,32,512], index: 0, kind: input, shape index: {}]
  %s1 = inlined_call_operand.vmem [shape: f32[2,8,512], index: 1, kind: input, shape index: {}]
  %s2 = inlined_call_operand.vmem [shape: f32[2,8,1], index: 2, kind: input, shape index: {}]
  %s3 = inlined_call_operand.vmem [shape: f32[2,32,1], index: 3, kind: input, shape index: {}]
  %s4 = inlined_call_operand.hbm [shape: f32[1,512], index: 4, kind: output, shape index: {}]
  %s5 = sld [smem:[#allocation0]]
  $region26: #{csdi_forward_batched.1} parent=0
    _
  %s7 = ssub.s32 1, %s5
  %s8 = scalar_select 0, %s7, %s5
  $region1: #{csdi_forward_batched.1} parent=0
    #allocation2 [shape = 'u8[2048]{0}', space=vmem, size = 0x800, scoped, tag = 'output window, operand 0, single buffered']
    #allocation3 [shape = 's32[1]{0}', space=sflag, size = 0x4, scoped, tag = 'scoped memory for csdi_forward_batched.1']
    %9 = vsyncpa [#allocation3], 0
    // Predicated region
    $region2: #{csdi_forward_batched.1} parent=1 // pred_check
      _
    $region3: #{csdi_forward_batched.1} parent=1 // pred_check_branch
      %11 = sbr.rel (0) target = $region5
    $region4: #{csdi_forward_batched.1} parent=1 // pred_region
      _
    $region5: #{csdi_forward_batched.1} parent=1 // pred_fallthru
      _
    // Predicated region
    $region6: #{csdi_forward_batched.1} parent=1 // pred_check
      _
    $region7: #{csdi_forward_batched.1} parent=1 // pred_check_branch
      %13 = sbr.rel (0) target = $region9
    $region8: #{csdi_forward_batched.1} parent=1 // pred_region
      _
    $region9: #{csdi_forward_batched.1} parent=1 // pred_fallthru
      _
    // Predicated region
    $region10: #{csdi_forward_batched.1} parent=1 // pred_check
      _
    $region11: #{csdi_forward_batched.1} parent=1 // pred_check_branch
      %15 = sbr.rel (0) target = $region13
    $region12: #{csdi_forward_batched.1} parent=1 // pred_region
      _
    $region13: #{csdi_forward_batched.1} parent=1 // pred_fallthru
      _
    // Predicated region
    $region14: #{csdi_forward_batched.1} parent=1 // pred_check
      _
    $region15: #{csdi_forward_batched.1} parent=1 // pred_check_branch
      %17 = sbr.rel (0) target = $region17
    $region16: #{csdi_forward_batched.1} parent=1 // pred_region
      _
    $region17: #{csdi_forward_batched.1} parent=1 // pred_fallthru
      _
    %v18 = vld [vmem:[%s0] sm:$0xff]
    %v19 = vld [vmem:[%s0 + $0x8] sm:$0xff]
    %v20 = vld [vmem:[%s0 + $0x10] sm:$0xff]
    %v21 = vld [vmem:[%s0 + $0x18] sm:$0xff]
    %v22 = vld [vmem:[%s0 + $0x20] sm:$0xff]
    %v23 = vld [vmem:[%s0 + $0x28] sm:$0xff]
    %v24 = vld [vmem:[%s0 + $0x30] sm:$0xff]
    %v25 = vld [vmem:[%s0 + $0x38] sm:$0xff]
    %v26 = vld [vmem:[%s0 + $0x40] sm:$0xff]
    %v27 = vld [vmem:[%s0 + $0x48] sm:$0xff]
    %v28 = vld [vmem:[%s0 + $0x50] sm:$0xff]
    %v29 = vld [vmem:[%s0 + $0x58] sm:$0xff]
    %v30 = vld [vmem:[%s0 + $0x60] sm:$0xff]
    %v31 = vld [vmem:[%s0 + $0x68] sm:$0xff]
    %v32 = vld [vmem:[%s0 + $0x70] sm:$0xff]
    %v33 = vld [vmem:[%s0 + $0x78] sm:$0xff]
    %v34 = vld [vmem:[%s0 + $0x80] sm:$0xff]
    %v35 = vld [vmem:[%s0 + $0x88] sm:$0xff]
    %v36 = vld [vmem:[%s0 + $0x90] sm:$0xff]
    %v37 = vld [vmem:[%s0 + $0x98] sm:$0xff]
    %v38 = vld [vmem:[%s0 + $0xa0] sm:$0xff]
    %v39 = vld [vmem:[%s0 + $0xa8] sm:$0xff]
    %v40 = vld [vmem:[%s0 + $0xb0] sm:$0xff]
    %v41 = vld [vmem:[%s0 + $0xb8] sm:$0xff]
    %v42 = vld [vmem:[%s0 + $0xc0] sm:$0xff]
    %v43 = vld [vmem:[%s0 + $0xc8] sm:$0xff]
    %v44 = vld [vmem:[%s0 + $0xd0] sm:$0xff]
    %v45 = vld [vmem:[%s0 + $0xd8] sm:$0xff]
    %v46 = vld [vmem:[%s0 + $0xe0] sm:$0xff]
    %v47 = vld [vmem:[%s0 + $0xe8] sm:$0xff]
    %v48 = vld [vmem:[%s0 + $0xf0] sm:$0xff]
    %v49 = vld [vmem:[%s0 + $0xf8] sm:$0xff]
    %v50 = vld [vmem:[%s0 + $0x100] sm:$0xff]
    %v51 = vld [vmem:[%s0 + $0x108] sm:$0xff]
    %v52 = vld [vmem:[%s0 + $0x110] sm:$0xff]
    %v53 = vld [vmem:[%s0 + $0x118] sm:$0xff]
    %v54 = vld [vmem:[%s0 + $0x120] sm:$0xff]
    %v55 = vld [vmem:[%s0 + $0x128] sm:$0xff]
    %v56 = vld [vmem:[%s0 + $0x130] sm:$0xff]
    %v57 = vld [vmem:[%s0 + $0x138] sm:$0xff]
    %v58 = vld [vmem:[%s0 + $0x140] sm:$0xff]
    %v59 = vld [vmem:[%s0 + $0x148] sm:$0xff]
    %v60 = vld [vmem:[%s0 + $0x150] sm:$0xff]
    %v61 = vld [vmem:[%s0 + $0x158] sm:$0xff]
    %v62 = vld [vmem:[%s0 + $0x160] sm:$0xff]
    %v63 = vld [vmem:[%s0 + $0x168] sm:$0xff]
    %v64 = vld [vmem:[%s0 + $0x170] sm:$0xff]
    %v65 = vld [vmem:[%s0 + $0x178] sm:$0xff]
    %v66 = vld [vmem:[%s0 + $0x180] sm:$0xff]
    %v67 = vld [vmem:[%s0 + $0x188] sm:$0xff]
    %v68 = vld [vmem:[%s0 + $0x190] sm:$0xff]
    %v69 = vld [vmem:[%s0 + $0x198] sm:$0xff]
    %v70 = vld [vmem:[%s0 + $0x1a0] sm:$0xff]
    %v71 = vld [vmem:[%s0 + $0x1a8] sm:$0xff]
    %v72 = vld [vmem:[%s0 + $0x1b0] sm:$0xff]
    %v73 = vld [vmem:[%s0 + $0x1b8] sm:$0xff]
    %v74 = vld [vmem:[%s0 + $0x1c0] sm:$0xff]
    %v75 = vld [vmem:[%s0 + $0x1c8] sm:$0xff]
    %v76 = vld [vmem:[%s0 + $0x1d0] sm:$0xff]
    %v77 = vld [vmem:[%s0 + $0x1d8] sm:$0xff]
    %v78 = vld [vmem:[%s0 + $0x1e0] sm:$0xff]
    %v79 = vld [vmem:[%s0 + $0x1e8] sm:$0xff]
    %v80 = vld [vmem:[%s0 + $0x1f0] sm:$0xff]
    %v81 = vld [vmem:[%s0 + $0x1f8] sm:$0xff]
    %v82 = vld [vmem:[%s0 + $0x200] sm:$0xff]
    %v83 = vld [vmem:[%s0 + $0x208] sm:$0xff]
    %v84 = vld [vmem:[%s0 + $0x210] sm:$0xff]
    %v85 = vld [vmem:[%s0 + $0x218] sm:$0xff]
    %v86 = vld [vmem:[%s0 + $0x220] sm:$0xff]
    %v87 = vld [vmem:[%s0 + $0x228] sm:$0xff]
    %v88 = vld [vmem:[%s0 + $0x230] sm:$0xff]
    %v89 = vld [vmem:[%s0 + $0x238] sm:$0xff]
    %v90 = vld [vmem:[%s0 + $0x240] sm:$0xff]
    %v91 = vld [vmem:[%s0 + $0x248] sm:$0xff]
    %v92 = vld [vmem:[%s0 + $0x250] sm:$0xff]
    %v93 = vld [vmem:[%s0 + $0x258] sm:$0xff]
    %v94 = vld [vmem:[%s0 + $0x260] sm:$0xff]
    %v95 = vld [vmem:[%s0 + $0x268] sm:$0xff]
    %v96 = vld [vmem:[%s0 + $0x270] sm:$0xff]
    %v97 = vld [vmem:[%s0 + $0x278] sm:$0xff]
    %v98 = vld [vmem:[%s0 + $0x280] sm:$0xff]
    %v99 = vld [vmem:[%s0 + $0x288] sm:$0xff]
    %v100 = vld [vmem:[%s0 + $0x290] sm:$0xff]
    %v101 = vld [vmem:[%s0 + $0x298] sm:$0xff]
    %v102 = vld [vmem:[%s0 + $0x2a0] sm:$0xff]
    %v103 = vld [vmem:[%s0 + $0x2a8] sm:$0xff]
    %v104 = vld [vmem:[%s0 + $0x2b0] sm:$0xff]
    %v105 = vld [vmem:[%s0 + $0x2b8] sm:$0xff]
    %v106 = vld [vmem:[%s0 + $0x2c0] sm:$0xff]
    %v107 = vld [vmem:[%s0 + $0x2c8] sm:$0xff]
    %v108 = vld [vmem:[%s0 + $0x2d0] sm:$0xff]
    %v109 = vld [vmem:[%s0 + $0x2d8] sm:$0xff]
    %v110 = vld [vmem:[%s0 + $0x2e0] sm:$0xff]
    %v111 = vld [vmem:[%s0 + $0x2e8] sm:$0xff]
    %v112 = vld [vmem:[%s0 + $0x2f0] sm:$0xff]
    %v113 = vld [vmem:[%s0 + $0x2f8] sm:$0xff]
    %v114 = vld [vmem:[%s0 + $0x300] sm:$0xff]
    %v115 = vld [vmem:[%s0 + $0x308] sm:$0xff]
    %v116 = vld [vmem:[%s0 + $0x310] sm:$0xff]
    %v117 = vld [vmem:[%s0 + $0x318] sm:$0xff]
    %v118 = vld [vmem:[%s0 + $0x320] sm:$0xff]
    %v119 = vld [vmem:[%s0 + $0x328] sm:$0xff]
    %v120 = vld [vmem:[%s0 + $0x330] sm:$0xff]
    %v121 = vld [vmem:[%s0 + $0x338] sm:$0xff]
    %v122 = vld [vmem:[%s0 + $0x340] sm:$0xff]
    %v123 = vld [vmem:[%s0 + $0x348] sm:$0xff]
    %v124 = vld [vmem:[%s0 + $0x350] sm:$0xff]
    %v125 = vld [vmem:[%s0 + $0x358] sm:$0xff]
    %v126 = vld [vmem:[%s0 + $0x360] sm:$0xff]
    %v127 = vld [vmem:[%s0 + $0x368] sm:$0xff]
    %v128 = vld [vmem:[%s0 + $0x370] sm:$0xff]
    %v129 = vld [vmem:[%s0 + $0x378] sm:$0xff]
    %v130 = vld [vmem:[%s0 + $0x380] sm:$0xff]
    %v131 = vld [vmem:[%s0 + $0x388] sm:$0xff]
    %v132 = vld [vmem:[%s0 + $0x390] sm:$0xff]
    %v133 = vld [vmem:[%s0 + $0x398] sm:$0xff]
    %v134 = vld [vmem:[%s0 + $0x3a0] sm:$0xff]
    %v135 = vld [vmem:[%s0 + $0x3a8] sm:$0xff]
    %v136 = vld [vmem:[%s0 + $0x3b0] sm:$0xff]
    %v137 = vld [vmem:[%s0 + $0x3b8] sm:$0xff]
    %v138 = vld [vmem:[%s0 + $0x3c0] sm:$0xff]
    %v139 = vld [vmem:[%s0 + $0x3c8] sm:$0xff]
    %v140 = vld [vmem:[%s0 + $0x3d0] sm:$0xff]
    %v141 = vld [vmem:[%s0 + $0x3d8] sm:$0xff]
    %v142 = vld [vmem:[%s0 + $0x3e0] sm:$0xff]
    %v143 = vld [vmem:[%s0 + $0x3e8] sm:$0xff]
    %v144 = vld [vmem:[%s0 + $0x3f0] sm:$0xff]
    %v145 = vld [vmem:[%s0 + $0x3f8] sm:$0xff]
    %v146 = vmax.f32 %v18, 0.0
    %v147 = vmax.f32 %v19, 0.0
    %v148 = vmax.f32 %v20, 0.0
    %v149 = vmax.f32 %v21, 0.0
    %v150 = vmax.f32 %v22, 0.0
    %v151 = vmax.f32 %v23, 0.0
    %v152 = vmax.f32 %v24, 0.0
    %v153 = vmax.f32 %v25, 0.0
    %v154 = vmax.f32 %v26, 0.0
    %v155 = vmax.f32 %v27, 0.0
    %v156 = vmax.f32 %v28, 0.0
    %v157 = vmax.f32 %v29, 0.0
    %v158 = vmax.f32 %v30, 0.0
    %v159 = vmax.f32 %v31, 0.0
    %v160 = vmax.f32 %v32, 0.0
    %v161 = vmax.f32 %v33, 0.0
    %v162 = vmax.f32 %v34, 0.0
    %v163 = vmax.f32 %v35, 0.0
    %v164 = vmax.f32 %v36, 0.0
    %v165 = vmax.f32 %v37, 0.0
    %v166 = vmax.f32 %v38, 0.0
    %v167 = vmax.f32 %v39, 0.0
    %v168 = vmax.f32 %v40, 0.0
    %v169 = vmax.f32 %v41, 0.0
    %v170 = vmax.f32 %v42, 0.0
    %v171 = vmax.f32 %v43, 0.0
    %v172 = vmax.f32 %v44, 0.0
    %v173 = vmax.f32 %v45, 0.0
    %v174 = vmax.f32 %v46, 0.0
    %v175 = vmax.f32 %v47, 0.0
    %v176 = vmax.f32 %v48, 0.0
    %v177 = vmax.f32 %v49, 0.0
    %v178 = vmax.f32 %v50, 0.0
    %v179 = vmax.f32 %v51, 0.0
    %v180 = vmax.f32 %v52, 0.0
    %v181 = vmax.f32 %v53, 0.0
    %v182 = vmax.f32 %v54, 0.0
    %v183 = vmax.f32 %v55, 0.0
    %v184 = vmax.f32 %v56, 0.0
    %v185 = vmax.f32 %v57, 0.0
    %v186 = vmax.f32 %v58, 0.0
    %v187 = vmax.f32 %v59, 0.0
    %v188 = vmax.f32 %v60, 0.0
    %v189 = vmax.f32 %v61, 0.0
    %v190 = vmax.f32 %v62, 0.0
    %v191 = vmax.f32 %v63, 0.0
    %v192 = vmax.f32 %v64, 0.0
    %v193 = vmax.f32 %v65, 0.0
    %v194 = vmax.f32 %v66, 0.0
    %v195 = vmax.f32 %v67, 0.0
    %v196 = vmax.f32 %v68, 0.0
    %v197 = vmax.f32 %v69, 0.0
    %v198 = vmax.f32 %v70, 0.0
    %v199 = vmax.f32 %v71, 0.0
    %v200 = vmax.f32 %v72, 0.0
    %v201 = vmax.f32 %v73, 0.0
    %v202 = vmax.f32 %v74, 0.0
    %v203 = vmax.f32 %v75, 0.0
    %v204 = vmax.f32 %v76, 0.0
    %v205 = vmax.f32 %v77, 0.0
    %v206 = vmax.f32 %v78, 0.0
    %v207 = vmax.f32 %v79, 0.0
    %v208 = vmax.f32 %v80, 0.0
    %v209 = vmax.f32 %v81, 0.0
    %v210 = vmax.f32 %v82, 0.0
    %v211 = vmax.f32 %v83, 0.0
    %v212 = vmax.f32 %v84, 0.0
    %v213 = vmax.f32 %v85, 0.0
    %v214 = vmax.f32 %v86, 0.0
    %v215 = vmax.f32 %v87, 0.0
    %v216 = vmax.f32 %v88, 0.0
    %v217 = vmax.f32 %v89, 0.0
    %v218 = vmax.f32 %v90, 0.0
    %v219 = vmax.f32 %v91, 0.0
    %v220 = vmax.f32 %v92, 0.0
    %v221 = vmax.f32 %v93, 0.0
    %v222 = vmax.f32 %v94, 0.0
    %v223 = vmax.f32 %v95, 0.0
    %v224 = vmax.f32 %v96, 0.0
    %v225 = vmax.f32 %v97, 0.0
    %v226 = vmax.f32 %v98, 0.0
    %v227 = vmax.f32 %v99, 0.0
    %v228 = vmax.f32 %v100, 0.0
    %v229 = vmax.f32 %v101, 0.0
    %v230 = vmax.f32 %v102, 0.0
    %v231 = vmax.f32 %v103, 0.0
    %v232 = vmax.f32 %v104, 0.0
    %v233 = vmax.f32 %v105, 0.0
    %v234 = vmax.f32 %v106, 0.0
    %v235 = vmax.f32 %v107, 0.0
    %v236 = vmax.f32 %v108, 0.0
    %v237 = vmax.f32 %v109, 0.0
    %v238 = vmax.f32 %v110, 0.0
    %v239 = vmax.f32 %v111, 0.0
    %v240 = vmax.f32 %v112, 0.0
    %v241 = vmax.f32 %v113, 0.0
    %v242 = vmax.f32 %v114, 0.0
    %v243 = vmax.f32 %v115, 0.0
    %v244 = vmax.f32 %v116, 0.0
    %v245 = vmax.f32 %v117, 0.0
    %v246 = vmax.f32 %v118, 0.0
    %v247 = vmax.f32 %v119, 0.0
    %v248 = vmax.f32 %v120, 0.0
    %v249 = vmax.f32 %v121, 0.0
    %v250 = vmax.f32 %v122, 0.0
    %v251 = vmax.f32 %v123, 0.0
    %v252 = vmax.f32 %v124, 0.0
    %v253 = vmax.f32 %v125, 0.0
    %v254 = vmax.f32 %v126, 0.0
    %v255 = vmax.f32 %v127, 0.0
    %v256 = vmax.f32 %v128, 0.0
    %v257 = vmax.f32 %v129, 0.0
    %v258 = vmax.f32 %v130, 0.0
    %v259 = vmax.f32 %v131, 0.0
    %v260 = vmax.f32 %v132, 0.0
    %v261 = vmax.f32 %v133, 0.0
    %v262 = vmax.f32 %v134, 0.0
    %v263 = vmax.f32 %v135, 0.0
    %v264 = vmax.f32 %v136, 0.0
    %v265 = vmax.f32 %v137, 0.0
    %v266 = vmax.f32 %v138, 0.0
    %v267 = vmax.f32 %v139, 0.0
    %v268 = vmax.f32 %v140, 0.0
    %v269 = vmax.f32 %v141, 0.0
    %v270 = vmax.f32 %v142, 0.0
    %v271 = vmax.f32 %v143, 0.0
    %v272 = vmax.f32 %v144, 0.0
    %v273 = vmax.f32 %v145, 0.0
    %v274 = vld [vmem:[%s3] sm:$0xff]
    %v275 = vld [vmem:[%s3 + $0x8] sm:$0xff]
    %v276 = vld [vmem:[%s3 + $0x10] sm:$0xff]
    %v277 = vld [vmem:[%s3 + $0x18] sm:$0xff]
    %v278 = vld [vmem:[%s3 + $0x20] sm:$0xff]
    %v279 = vld [vmem:[%s3 + $0x28] sm:$0xff]
    %v280 = vld [vmem:[%s3 + $0x30] sm:$0xff]
    %v281 = vld [vmem:[%s3 + $0x38] sm:$0xff]
    %283 = vset.pattern.permute.xlu0 0
    %284 = vperm.xlu0 %283, %v274
    %v285 = vpop.permute.xlu0 %284
    %288 = vset.pattern.permute.xlu0 0
    %289 = vperm.xlu0 %288, %v275
    %v290 = vpop.permute.xlu0 %289
    %293 = vset.pattern.permute.xlu0 0
    %294 = vperm.xlu0 %293, %v276
    %v295 = vpop.permute.xlu0 %294
    %298 = vset.pattern.permute.xlu0 0
    %299 = vperm.xlu0 %298, %v277
    %v300 = vpop.permute.xlu0 %299
    %v302 = vmul.f32 %v146, %v285
    %v303 = vmul.f32 %v147, %v285
    %v304 = vmul.f32 %v148, %v285
    %v305 = vmul.f32 %v149, %v285
    %v306 = vmul.f32 %v150, %v290
    %v307 = vmul.f32 %v151, %v290
    %v308 = vmul.f32 %v152, %v290
    %v309 = vmul.f32 %v153, %v290
    %v310 = vmul.f32 %v154, %v295
    %v311 = vmul.f32 %v155, %v295
    %v312 = vmul.f32 %v156, %v295
    %v313 = vmul.f32 %v157, %v295
    %v314 = vmul.f32 %v158, %v300
    %v315 = vmul.f32 %v159, %v300
    %v316 = vmul.f32 %v160, %v300
    %v317 = vmul.f32 %v161, %v300
    %v318 = vmul.f32 %v162, %v285
    %v319 = vmul.f32 %v163, %v285
    %v320 = vmul.f32 %v164, %v285
    %v321 = vmul.f32 %v165, %v285
    %v322 = vmul.f32 %v166, %v290
    %v323 = vmul.f32 %v167, %v290
    %v324 = vmul.f32 %v168, %v290
    %v325 = vmul.f32 %v169, %v290
    %v326 = vmul.f32 %v170, %v295
    %v327 = vmul.f32 %v171, %v295
    %v328 = vmul.f32 %v172, %v295
    %v329 = vmul.f32 %v173, %v295
    %v330 = vmul.f32 %v174, %v300
    %v331 = vmul.f32 %v175, %v300
    %v332 = vmul.f32 %v176, %v300
    %v333 = vmul.f32 %v177, %v300
    %v334 = vmul.f32 %v178, %v285
    %v335 = vmul.f32 %v179, %v285
    %v336 = vmul.f32 %v180, %v285
    %v337 = vmul.f32 %v181, %v285
    %v338 = vmul.f32 %v182, %v290
    %v339 = vmul.f32 %v183, %v290
    %v340 = vmul.f32 %v184, %v290
    %v341 = vmul.f32 %v185, %v290
    %v342 = vmul.f32 %v186, %v295
    %v343 = vmul.f32 %v187, %v295
    %v344 = vmul.f32 %v188, %v295
    %v345 = vmul.f32 %v189, %v295
    %v346 = vmul.f32 %v190, %v300
    %v347 = vmul.f32 %v191, %v300
    %v348 = vmul.f32 %v192, %v300
    %v349 = vmul.f32 %v193, %v300
    %v350 = vmul.f32 %v194, %v285
    %v351 = vmul.f32 %v195, %v285
    %v352 = vmul.f32 %v196, %v285
    %v353 = vmul.f32 %v197, %v285
    %v354 = vmul.f32 %v198, %v290
    %v355 = vmul.f32 %v199, %v290
    %v356 = vmul.f32 %v200, %v290
    %v357 = vmul.f32 %v201, %v290
    %v358 = vmul.f32 %v202, %v295
    %v359 = vmul.f32 %v203, %v295
    %v360 = vmul.f32 %v204, %v295
    %v361 = vmul.f32 %v205, %v295
    %v362 = vmul.f32 %v206, %v300
    %v363 = vmul.f32 %v207, %v300
    %v364 = vmul.f32 %v208, %v300
    %v365 = vmul.f32 %v209, %v300
    %v366 = vmul.f32 %v210, %v285
    %v367 = vmul.f32 %v211, %v285
    %v368 = vmul.f32 %v212, %v285
    %v369 = vmul.f32 %v213, %v285
    %v370 = vmul.f32 %v214, %v290
    %v371 = vmul.f32 %v215, %v290
    %v372 = vmul.f32 %v216, %v290
    %v373 = vmul.f32 %v217, %v290
    %v374 = vmul.f32 %v218, %v295
    %v375 = vmul.f32 %v219, %v295
    %v376 = vmul.f32 %v220, %v295
    %v377 = vmul.f32 %v221, %v295
    %v378 = vmul.f32 %v222, %v300
    %v379 = vmul.f32 %v223, %v300
    %v380 = vmul.f32 %v224, %v300
    %v381 = vmul.f32 %v225, %v300
    %v382 = vmul.f32 %v226, %v285
    %v383 = vmul.f32 %v227, %v285
    %v384 = vmul.f32 %v228, %v285
    %v385 = vmul.f32 %v229, %v285
    %v386 = vmul.f32 %v230, %v290
    %v387 = vmul.f32 %v231, %v290
    %v388 = vmul.f32 %v232, %v290
    %v389 = vmul.f32 %v233, %v290
    %v390 = vmul.f32 %v234, %v295
    %v391 = vmul.f32 %v235, %v295
    %v392 = vmul.f32 %v236, %v295
    %v393 = vmul.f32 %v237, %v295
    %v394 = vmul.f32 %v238, %v300
    %v395 = vmul.f32 %v239, %v300
    %v396 = vmul.f32 %v240, %v300
    %v397 = vmul.f32 %v241, %v300
    %v398 = vmul.f32 %v242, %v285
    %v399 = vmul.f32 %v243, %v285
    %v400 = vmul.f32 %v244, %v285
    %v401 = vmul.f32 %v245, %v285
    %v402 = vmul.f32 %v246, %v290
    %v403 = vmul.f32 %v247, %v290
    %v404 = vmul.f32 %v248, %v290
    %v405 = vmul.f32 %v249, %v290
    %v406 = vmul.f32 %v250, %v295
    %v407 = vmul.f32 %v251, %v295
    %v408 = vmul.f32 %v252, %v295
    %v409 = vmul.f32 %v253, %v295
    %v410 = vmul.f32 %v254, %v300
    %v411 = vmul.f32 %v255, %v300
    %v412 = vmul.f32 %v256, %v300
    %v413 = vmul.f32 %v257, %v300
    %v414 = vmul.f32 %v258, %v285
    %v415 = vmul.f32 %v259, %v285
    %v416 = vmul.f32 %v260, %v285
    %v417 = vmul.f32 %v261, %v285
    %v418 = vmul.f32 %v262, %v290
    %v419 = vmul.f32 %v263, %v290
    %v420 = vmul.f32 %v264, %v290
    %v421 = vmul.f32 %v265, %v290
    %v422 = vmul.f32 %v266, %v295
    %v423 = vmul.f32 %v267, %v295
    %v424 = vmul.f32 %v268, %v295
    %v425 = vmul.f32 %v269, %v295
    %v426 = vmul.f32 %v270, %v300
    %v427 = vmul.f32 %v271, %v300
    %v428 = vmul.f32 %v272, %v300
    %v429 = vmul.f32 %v273, %v300
    %v430 = vadd.f32 %v302, %v306
    %v431 = vadd.f32 %v430, %v310
    %v432 = vadd.f32 %v431, %v314
    %v433 = vrot.slane %v432, 4
    %v434 = vadd.f32 %v432, %v433
    %v435 = vrot.slane %v434, 2
    %v436 = vadd.f32 %v434, %v435
    %v437 = vrot.slane %v436, 1
    %v438 = vadd.f32 %v436, %v437
    %v439 = vadd.f32 %v303, %v307
    %v440 = vadd.f32 %v439, %v311
    %v441 = vadd.f32 %v440, %v315
    %v442 = vrot.slane %v441, 4
    %v443 = vadd.f32 %v441, %v442
    %v444 = vrot.slane %v443, 2
    %v445 = vadd.f32 %v443, %v444
    %v446 = vrot.slane %v445, 1
    %v447 = vadd.f32 %v445, %v446
    %v448 = vadd.f32 %v304, %v308
    %v449 = vadd.f32 %v448, %v312
    %v450 = vadd.f32 %v449, %v316
    %v451 = vrot.slane %v450, 4
    %v452 = vadd.f32 %v450, %v451
    %v453 = vrot.slane %v452, 2
    %v454 = vadd.f32 %v452, %v453
    %v455 = vrot.slane %v454, 1
    %v456 = vadd.f32 %v454, %v455
    %v457 = vadd.f32 %v305, %v309
    %v458 = vadd.f32 %v457, %v313
    %v459 = vadd.f32 %v458, %v317
    %v460 = vrot.slane %v459, 4
    %v461 = vadd.f32 %v459, %v460
    %v462 = vrot.slane %v461, 2
    %v463 = vadd.f32 %v461, %v462
    %v464 = vrot.slane %v463, 1
    %v465 = vadd.f32 %v463, %v464
    %v466 = vadd.f32 %v318, %v322
    %v467 = vadd.f32 %v466, %v326
    %v468 = vadd.f32 %v467, %v330
    %v469 = vrot.slane %v468, 4
    %v470 = vadd.f32 %v468, %v469
    %v471 = vrot.slane %v470, 2
    %v472 = vadd.f32 %v470, %v471
    %v473 = vrot.slane %v472, 1
    %v474 = vadd.f32 %v472, %v473
    %v475 = vadd.f32 %v319, %v323
    %v476 = vadd.f32 %v475, %v327
    %v477 = vadd.f32 %v476, %v331
    %v478 = vrot.slane %v477, 4
    %v479 = vadd.f32 %v477, %v478
    %v480 = vrot.slane %v479, 2
    %v481 = vadd.f32 %v479, %v480
    %v482 = vrot.slane %v481, 1
    %v483 = vadd.f32 %v481, %v482
    %v484 = vadd.f32 %v320, %v324
    %v485 = vadd.f32 %v484, %v328
    %v486 = vadd.f32 %v485, %v332
    %v487 = vrot.slane %v486, 4
    %v488 = vadd.f32 %v486, %v487
    %v489 = vrot.slane %v488, 2
    %v490 = vadd.f32 %v488, %v489
    %v491 = vrot.slane %v490, 1
    %v492 = vadd.f32 %v490, %v491
    %v493 = vadd.f32 %v321, %v325
    %v494 = vadd.f32 %v493, %v329
    %v495 = vadd.f32 %v494, %v333
    %v496 = vrot.slane %v495, 4
    %v497 = vadd.f32 %v495, %v496
    %v498 = vrot.slane %v497, 2
    %v499 = vadd.f32 %v497, %v498
    %v500 = vrot.slane %v499, 1
    %v501 = vadd.f32 %v499, %v500
    %v502 = vadd.f32 %v334, %v338
    %v503 = vadd.f32 %v502, %v342
    %v504 = vadd.f32 %v503, %v346
    %v505 = vrot.slane %v504, 4
    %v506 = vadd.f32 %v504, %v505
    %v507 = vrot.slane %v506, 2
    %v508 = vadd.f32 %v506, %v507
    %v509 = vrot.slane %v508, 1
    %v510 = vadd.f32 %v508, %v509
    %v511 = vadd.f32 %v335, %v339
    %v512 = vadd.f32 %v511, %v343
    %v513 = vadd.f32 %v512, %v347
    %v514 = vrot.slane %v513, 4
    %v515 = vadd.f32 %v513, %v514
    %v516 = vrot.slane %v515, 2
    %v517 = vadd.f32 %v515, %v516
    %v518 = vrot.slane %v517, 1
    %v519 = vadd.f32 %v517, %v518
    %v520 = vadd.f32 %v336, %v340
    %v521 = vadd.f32 %v520, %v344
    %v522 = vadd.f32 %v521, %v348
    %v523 = vrot.slane %v522, 4
    %v524 = vadd.f32 %v522, %v523
    %v525 = vrot.slane %v524, 2
    %v526 = vadd.f32 %v524, %v525
    %v527 = vrot.slane %v526, 1
    %v528 = vadd.f32 %v526, %v527
    %v529 = vadd.f32 %v337, %v341
    %v530 = vadd.f32 %v529, %v345
    %v531 = vadd.f32 %v530, %v349
    %v532 = vrot.slane %v531, 4
    %v533 = vadd.f32 %v531, %v532
    %v534 = vrot.slane %v533, 2
    %v535 = vadd.f32 %v533, %v534
    %v536 = vrot.slane %v535, 1
    %v537 = vadd.f32 %v535, %v536
    %v538 = vadd.f32 %v350, %v354
    %v539 = vadd.f32 %v538, %v358
    %v540 = vadd.f32 %v539, %v362
    %v541 = vrot.slane %v540, 4
    %v542 = vadd.f32 %v540, %v541
    %v543 = vrot.slane %v542, 2
    %v544 = vadd.f32 %v542, %v543
    %v545 = vrot.slane %v544, 1
    %v546 = vadd.f32 %v544, %v545
    %v547 = vadd.f32 %v351, %v355
    %v548 = vadd.f32 %v547, %v359
    %v549 = vadd.f32 %v548, %v363
    %v550 = vrot.slane %v549, 4
    %v551 = vadd.f32 %v549, %v550
    %v552 = vrot.slane %v551, 2
    %v553 = vadd.f32 %v551, %v552
    %v554 = vrot.slane %v553, 1
    %v555 = vadd.f32 %v553, %v554
    %v556 = vadd.f32 %v352, %v356
    %v557 = vadd.f32 %v556, %v360
    %v558 = vadd.f32 %v557, %v364
    %v559 = vrot.slane %v558, 4
    %v560 = vadd.f32 %v558, %v559
    %v561 = vrot.slane %v560, 2
    %v562 = vadd.f32 %v560, %v561
    %v563 = vrot.slane %v562, 1
    %v564 = vadd.f32 %v562, %v563
    %v565 = vadd.f32 %v353, %v357
    %v566 = vadd.f32 %v565, %v361
    %v567 = vadd.f32 %v566, %v365
    %v568 = vrot.slane %v567, 4
    %v569 = vadd.f32 %v567, %v568
    %v570 = vrot.slane %v569, 2
    %v571 = vadd.f32 %v569, %v570
    %v572 = vrot.slane %v571, 1
    %v573 = vadd.f32 %v571, %v572
    %v574 = vadd.f32 %v366, %v370
    %v575 = vadd.f32 %v574, %v374
    %v576 = vadd.f32 %v575, %v378
    %v577 = vrot.slane %v576, 4
    %v578 = vadd.f32 %v576, %v577
    %v579 = vrot.slane %v578, 2
    %v580 = vadd.f32 %v578, %v579
    %v581 = vrot.slane %v580, 1
    %v582 = vadd.f32 %v580, %v581
    %v583 = vadd.f32 %v367, %v371
    %v584 = vadd.f32 %v583, %v375
    %v585 = vadd.f32 %v584, %v379
    %v586 = vrot.slane %v585, 4
    %v587 = vadd.f32 %v585, %v586
    %v588 = vrot.slane %v587, 2
    %v589 = vadd.f32 %v587, %v588
    %v590 = vrot.slane %v589, 1
    %v591 = vadd.f32 %v589, %v590
    %v592 = vadd.f32 %v368, %v372
    %v593 = vadd.f32 %v592, %v376
    %v594 = vadd.f32 %v593, %v380
    %v595 = vrot.slane %v594, 4
    %v596 = vadd.f32 %v594, %v595
    %v597 = vrot.slane %v596, 2
    %v598 = vadd.f32 %v596, %v597
    %v599 = vrot.slane %v598, 1
    %v600 = vadd.f32 %v598, %v599
    %v601 = vadd.f32 %v369, %v373
    %v602 = vadd.f32 %v601, %v377
    %v603 = vadd.f32 %v602, %v381
    %v604 = vrot.slane %v603, 4
    %v605 = vadd.f32 %v603, %v604
    %v606 = vrot.slane %v605, 2
    %v607 = vadd.f32 %v605, %v606
    %v608 = vrot.slane %v607, 1
    %v609 = vadd.f32 %v607, %v608
    %v610 = vadd.f32 %v382, %v386
    %v611 = vadd.f32 %v610, %v390
    %v612 = vadd.f32 %v611, %v394
    %v613 = vrot.slane %v612, 4
    %v614 = vadd.f32 %v612, %v613
    %v615 = vrot.slane %v614, 2
    %v616 = vadd.f32 %v614, %v615
    %v617 = vrot.slane %v616, 1
    %v618 = vadd.f32 %v616, %v617
    %v619 = vadd.f32 %v383, %v387
    %v620 = vadd.f32 %v619, %v391
    %v621 = vadd.f32 %v620, %v395
    %v622 = vrot.slane %v621, 4
    %v623 = vadd.f32 %v621, %v622
    %v624 = vrot.slane %v623, 2
    %v625 = vadd.f32 %v623, %v624
    %v626 = vrot.slane %v625, 1
    %v627 = vadd.f32 %v625, %v626
    %v628 = vadd.f32 %v384, %v388
    %v629 = vadd.f32 %v628, %v392
    %v630 = vadd.f32 %v629, %v396
    %v631 = vrot.slane %v630, 4
    %v632 = vadd.f32 %v630, %v631
    %v633 = vrot.slane %v632, 2
    %v634 = vadd.f32 %v632, %v633
    %v635 = vrot.slane %v634, 1
    %v636 = vadd.f32 %v634, %v635
    %v637 = vadd.f32 %v385, %v389
    %v638 = vadd.f32 %v637, %v393
    %v639 = vadd.f32 %v638, %v397
    %v640 = vrot.slane %v639, 4
    %v641 = vadd.f32 %v639, %v640
    %v642 = vrot.slane %v641, 2
    %v643 = vadd.f32 %v641, %v642
    %v644 = vrot.slane %v643, 1
    %v645 = vadd.f32 %v643, %v644
    %v646 = vadd.f32 %v398, %v402
    %v647 = vadd.f32 %v646, %v406
    %v648 = vadd.f32 %v647, %v410
    %v649 = vrot.slane %v648, 4
    %v650 = vadd.f32 %v648, %v649
    %v651 = vrot.slane %v650, 2
    %v652 = vadd.f32 %v650, %v651
    %v653 = vrot.slane %v652, 1
    %v654 = vadd.f32 %v652, %v653
    %v655 = vadd.f32 %v399, %v403
    %v656 = vadd.f32 %v655, %v407
    %v657 = vadd.f32 %v656, %v411
    %v658 = vrot.slane %v657, 4
    %v659 = vadd.f32 %v657, %v658
    %v660 = vrot.slane %v659, 2
    %v661 = vadd.f32 %v659, %v660
    %v662 = vrot.slane %v661, 1
    %v663 = vadd.f32 %v661, %v662
    %v664 = vadd.f32 %v400, %v404
    %v665 = vadd.f32 %v664, %v408
    %v666 = vadd.f32 %v665, %v412
    %v667 = vrot.slane %v666, 4
    %v668 = vadd.f32 %v666, %v667
    %v669 = vrot.slane %v668, 2
    %v670 = vadd.f32 %v668, %v669
    %v671 = vrot.slane %v670, 1
    %v672 = vadd.f32 %v670, %v671
    %v673 = vadd.f32 %v401, %v405
    %v674 = vadd.f32 %v673, %v409
    %v675 = vadd.f32 %v674, %v413
    %v676 = vrot.slane %v675, 4
    %v677 = vadd.f32 %v675, %v676
    %v678 = vrot.slane %v677, 2
    %v679 = vadd.f32 %v677, %v678
    %v680 = vrot.slane %v679, 1
    %v681 = vadd.f32 %v679, %v680
    %v682 = vadd.f32 %v414, %v418
    %v683 = vadd.f32 %v682, %v422
    %v684 = vadd.f32 %v683, %v426
    %v685 = vrot.slane %v684, 4
    %v686 = vadd.f32 %v684, %v685
    %v687 = vrot.slane %v686, 2
    %v688 = vadd.f32 %v686, %v687
    %v689 = vrot.slane %v688, 1
    %v690 = vadd.f32 %v688, %v689
    %v691 = vadd.f32 %v415, %v419
    %v692 = vadd.f32 %v691, %v423
    %v693 = vadd.f32 %v692, %v427
    %v694 = vrot.slane %v693, 4
    %v695 = vadd.f32 %v693, %v694
    %v696 = vrot.slane %v695, 2
    %v697 = vadd.f32 %v695, %v696
    %v698 = vrot.slane %v697, 1
    %v699 = vadd.f32 %v697, %v698
    %v700 = vadd.f32 %v416, %v420
    %v701 = vadd.f32 %v700, %v424
    %v702 = vadd.f32 %v701, %v428
    %v703 = vrot.slane %v702, 4
    %v704 = vadd.f32 %v702, %v703
    %v705 = vrot.slane %v704, 2
    %v706 = vadd.f32 %v704, %v705
    %v707 = vrot.slane %v706, 1
    %v708 = vadd.f32 %v706, %v707
    %v709 = vadd.f32 %v417, %v421
    %v710 = vadd.f32 %v709, %v425
    %v711 = vadd.f32 %v710, %v429
    %v712 = vrot.slane %v711, 4
    %v713 = vadd.f32 %v711, %v712
    %v714 = vrot.slane %v713, 2
    %v715 = vadd.f32 %v713, %v714
    %v716 = vrot.slane %v715, 1
    %v717 = vadd.f32 %v715, %v716
    %719 = vset.pattern.permute.xlu0 0
    %720 = vperm.xlu0 %719, %v278
    %v721 = vpop.permute.xlu0 %720
    %724 = vset.pattern.permute.xlu0 0
    %725 = vperm.xlu0 %724, %v279
    %v726 = vpop.permute.xlu0 %725
    %729 = vset.pattern.permute.xlu0 0
    %730 = vperm.xlu0 %729, %v280
    %v731 = vpop.permute.xlu0 %730
    %734 = vset.pattern.permute.xlu0 0
    %735 = vperm.xlu0 %734, %v281
    %v736 = vpop.permute.xlu0 %735
    %v738 = vmul.f32 %v146, %v721
    %v739 = vmul.f32 %v147, %v721
    %v740 = vmul.f32 %v148, %v721
    %v741 = vmul.f32 %v149, %v721
    %v742 = vmul.f32 %v150, %v726
    %v743 = vmul.f32 %v151, %v726
    %v744 = vmul.f32 %v152, %v726
    %v745 = vmul.f32 %v153, %v726
    %v746 = vmul.f32 %v154, %v731
    %v747 = vmul.f32 %v155, %v731
    %v748 = vmul.f32 %v156, %v731
    %v749 = vmul.f32 %v157, %v731
    %v750 = vmul.f32 %v158, %v736
    %v751 = vmul.f32 %v159, %v736
    %v752 = vmul.f32 %v160, %v736
    %v753 = vmul.f32 %v161, %v736
    %v754 = vmul.f32 %v162, %v721
    %v755 = vmul.f32 %v163, %v721
    %v756 = vmul.f32 %v164, %v721
    %v757 = vmul.f32 %v165, %v721
    %v758 = vmul.f32 %v166, %v726
    %v759 = vmul.f32 %v167, %v726
    %v760 = vmul.f32 %v168, %v726
    %v761 = vmul.f32 %v169, %v726
    %v762 = vmul.f32 %v170, %v731
    %v763 = vmul.f32 %v171, %v731
    %v764 = vmul.f32 %v172, %v731
    %v765 = vmul.f32 %v173, %v731
    %v766 = vmul.f32 %v174, %v736
    %v767 = vmul.f32 %v175, %v736
    %v768 = vmul.f32 %v176, %v736
    %v769 = vmul.f32 %v177, %v736
    %v770 = vmul.f32 %v178, %v721
    %v771 = vmul.f32 %v179, %v721
    %v772 = vmul.f32 %v180, %v721
    %v773 = vmul.f32 %v181, %v721
    %v774 = vmul.f32 %v182, %v726
    %v775 = vmul.f32 %v183, %v726
    %v776 = vmul.f32 %v184, %v726
    %v777 = vmul.f32 %v185, %v726
    %v778 = vmul.f32 %v186, %v731
    %v779 = vmul.f32 %v187, %v731
    %v780 = vmul.f32 %v188, %v731
    %v781 = vmul.f32 %v189, %v731
    %v782 = vmul.f32 %v190, %v736
    %v783 = vmul.f32 %v191, %v736
    %v784 = vmul.f32 %v192, %v736
    %v785 = vmul.f32 %v193, %v736
    %v786 = vmul.f32 %v194, %v721
    %v787 = vmul.f32 %v195, %v721
    %v788 = vmul.f32 %v196, %v721
    %v789 = vmul.f32 %v197, %v721
    %v790 = vmul.f32 %v198, %v726
    %v791 = vmul.f32 %v199, %v726
    %v792 = vmul.f32 %v200, %v726
    %v793 = vmul.f32 %v201, %v726
    %v794 = vmul.f32 %v202, %v731
    %v795 = vmul.f32 %v203, %v731
    %v796 = vmul.f32 %v204, %v731
    %v797 = vmul.f32 %v205, %v731
    %v798 = vmul.f32 %v206, %v736
    %v799 = vmul.f32 %v207, %v736
    %v800 = vmul.f32 %v208, %v736
    %v801 = vmul.f32 %v209, %v736
    %v802 = vmul.f32 %v210, %v721
    %v803 = vmul.f32 %v211, %v721
    %v804 = vmul.f32 %v212, %v721
    %v805 = vmul.f32 %v213, %v721
    %v806 = vmul.f32 %v214, %v726
    %v807 = vmul.f32 %v215, %v726
    %v808 = vmul.f32 %v216, %v726
    %v809 = vmul.f32 %v217, %v726
    %v810 = vmul.f32 %v218, %v731
    %v811 = vmul.f32 %v219, %v731
    %v812 = vmul.f32 %v220, %v731
    %v813 = vmul.f32 %v221, %v731
    %v814 = vmul.f32 %v222, %v736
    %v815 = vmul.f32 %v223, %v736
    %v816 = vmul.f32 %v224, %v736
    %v817 = vmul.f32 %v225, %v736
    %v818 = vmul.f32 %v226, %v721
    %v819 = vmul.f32 %v227, %v721
    %v820 = vmul.f32 %v228, %v721
    %v821 = vmul.f32 %v229, %v721
    %v822 = vmul.f32 %v230, %v726
    %v823 = vmul.f32 %v231, %v726
    %v824 = vmul.f32 %v232, %v726
    %v825 = vmul.f32 %v233, %v726
    %v826 = vmul.f32 %v234, %v731
    %v827 = vmul.f32 %v235, %v731
    %v828 = vmul.f32 %v236, %v731
    %v829 = vmul.f32 %v237, %v731
    %v830 = vmul.f32 %v238, %v736
    %v831 = vmul.f32 %v239, %v736
    %v832 = vmul.f32 %v240, %v736
    %v833 = vmul.f32 %v241, %v736
    %v834 = vmul.f32 %v242, %v721
    %v835 = vmul.f32 %v243, %v721
    %v836 = vmul.f32 %v244, %v721
    %v837 = vmul.f32 %v245, %v721
    %v838 = vmul.f32 %v246, %v726
    %v839 = vmul.f32 %v247, %v726
    %v840 = vmul.f32 %v248, %v726
    %v841 = vmul.f32 %v249, %v726
    %v842 = vmul.f32 %v250, %v731
    %v843 = vmul.f32 %v251, %v731
    %v844 = vmul.f32 %v252, %v731
    %v845 = vmul.f32 %v253, %v731
    %v846 = vmul.f32 %v254, %v736
    %v847 = vmul.f32 %v255, %v736
    %v848 = vmul.f32 %v256, %v736
    %v849 = vmul.f32 %v257, %v736
    %v850 = vmul.f32 %v258, %v721
    %v851 = vmul.f32 %v259, %v721
    %v852 = vmul.f32 %v260, %v721
    %v853 = vmul.f32 %v261, %v721
    %v854 = vmul.f32 %v262, %v726
    %v855 = vmul.f32 %v263, %v726
    %v856 = vmul.f32 %v264, %v726
    %v857 = vmul.f32 %v265, %v726
    %v858 = vmul.f32 %v266, %v731
    %v859 = vmul.f32 %v267, %v731
    %v860 = vmul.f32 %v268, %v731
    %v861 = vmul.f32 %v269, %v731
    %v862 = vmul.f32 %v270, %v736
    %v863 = vmul.f32 %v271, %v736
    %v864 = vmul.f32 %v272, %v736
    %v865 = vmul.f32 %v273, %v736
    %v866 = vadd.f32 %v738, %v742
    %v867 = vadd.f32 %v866, %v746
    %v868 = vadd.f32 %v867, %v750
    %v869 = vrot.slane %v868, 4
    %v870 = vadd.f32 %v868, %v869
    %v871 = vrot.slane %v870, 2
    %v872 = vadd.f32 %v870, %v871
    %v873 = vrot.slane %v872, 1
    %v874 = vadd.f32 %v872, %v873
    %v875 = vadd.f32 %v739, %v743
    %v876 = vadd.f32 %v875, %v747
    %v877 = vadd.f32 %v876, %v751
    %v878 = vrot.slane %v877, 4
    %v879 = vadd.f32 %v877, %v878
    %v880 = vrot.slane %v879, 2
    %v881 = vadd.f32 %v879, %v880
    %v882 = vrot.slane %v881, 1
    %v883 = vadd.f32 %v881, %v882
    %v884 = vadd.f32 %v740, %v744
    %v885 = vadd.f32 %v884, %v748
    %v886 = vadd.f32 %v885, %v752
    %v887 = vrot.slane %v886, 4
    %v888 = vadd.f32 %v886, %v887
    %v889 = vrot.slane %v888, 2
    %v890 = vadd.f32 %v888, %v889
    %v891 = vrot.slane %v890, 1
    %v892 = vadd.f32 %v890, %v891
    %v893 = vadd.f32 %v741, %v745
    %v894 = vadd.f32 %v893, %v749
    %v895 = vadd.f32 %v894, %v753
    %v896 = vrot.slane %v895, 4
    %v897 = vadd.f32 %v895, %v896
    %v898 = vrot.slane %v897, 2
    %v899 = vadd.f32 %v897, %v898
    %v900 = vrot.slane %v899, 1
    %v901 = vadd.f32 %v899, %v900
    %v902 = vadd.f32 %v754, %v758
    %v903 = vadd.f32 %v902, %v762
    %v904 = vadd.f32 %v903, %v766
    %v905 = vrot.slane %v904, 4
    %v906 = vadd.f32 %v904, %v905
    %v907 = vrot.slane %v906, 2
    %v908 = vadd.f32 %v906, %v907
    %v909 = vrot.slane %v908, 1
    %v910 = vadd.f32 %v908, %v909
    %v911 = vadd.f32 %v755, %v759
    %v912 = vadd.f32 %v911, %v763
    %v913 = vadd.f32 %v912, %v767
    %v914 = vrot.slane %v913, 4
    %v915 = vadd.f32 %v913, %v914
    %v916 = vrot.slane %v915, 2
    %v917 = vadd.f32 %v915, %v916
    %v918 = vrot.slane %v917, 1
    %v919 = vadd.f32 %v917, %v918
    %v920 = vadd.f32 %v756, %v760
    %v921 = vadd.f32 %v920, %v764
    %v922 = vadd.f32 %v921, %v768
    %v923 = vrot.slane %v922, 4
    %v924 = vadd.f32 %v922, %v923
    %v925 = vrot.slane %v924, 2
    %v926 = vadd.f32 %v924, %v925
    %v927 = vrot.slane %v926, 1
    %v928 = vadd.f32 %v926, %v927
    %v929 = vadd.f32 %v757, %v761
    %v930 = vadd.f32 %v929, %v765
    %v931 = vadd.f32 %v930, %v769
    %v932 = vrot.slane %v931, 4
    %v933 = vadd.f32 %v931, %v932
    %v934 = vrot.slane %v933, 2
    %v935 = vadd.f32 %v933, %v934
    %v936 = vrot.slane %v935, 1
    %v937 = vadd.f32 %v935, %v936
    %v938 = vadd.f32 %v770, %v774
    %v939 = vadd.f32 %v938, %v778
    %v940 = vadd.f32 %v939, %v782
    %v941 = vrot.slane %v940, 4
    %v942 = vadd.f32 %v940, %v941
    %v943 = vrot.slane %v942, 2
    %v944 = vadd.f32 %v942, %v943
    %v945 = vrot.slane %v944, 1
    %v946 = vadd.f32 %v944, %v945
    %v947 = vadd.f32 %v771, %v775
    %v948 = vadd.f32 %v947, %v779
    %v949 = vadd.f32 %v948, %v783
    %v950 = vrot.slane %v949, 4
    %v951 = vadd.f32 %v949, %v950
    %v952 = vrot.slane %v951, 2
    %v953 = vadd.f32 %v951, %v952
    %v954 = vrot.slane %v953, 1
    %v955 = vadd.f32 %v953, %v954
    %v956 = vadd.f32 %v772, %v776
    %v957 = vadd.f32 %v956, %v780
    %v958 = vadd.f32 %v957, %v784
    %v959 = vrot.slane %v958, 4
    %v960 = vadd.f32 %v958, %v959
    %v961 = vrot.slane %v960, 2
    %v962 = vadd.f32 %v960, %v961
    %v963 = vrot.slane %v962, 1
    %v964 = vadd.f32 %v962, %v963
    %v965 = vadd.f32 %v773, %v777
    %v966 = vadd.f32 %v965, %v781
    %v967 = vadd.f32 %v966, %v785
    %v968 = vrot.slane %v967, 4
    %v969 = vadd.f32 %v967, %v968
    %v970 = vrot.slane %v969, 2
    %v971 = vadd.f32 %v969, %v970
    %v972 = vrot.slane %v971, 1
    %v973 = vadd.f32 %v971, %v972
    %v974 = vadd.f32 %v786, %v790
    %v975 = vadd.f32 %v974, %v794
    %v976 = vadd.f32 %v975, %v798
    %v977 = vrot.slane %v976, 4
    %v978 = vadd.f32 %v976, %v977
    %v979 = vrot.slane %v978, 2
    %v980 = vadd.f32 %v978, %v979
    %v981 = vrot.slane %v980, 1
    %v982 = vadd.f32 %v980, %v981
    %v983 = vadd.f32 %v787, %v791
    %v984 = vadd.f32 %v983, %v795
    %v985 = vadd.f32 %v984, %v799
    %v986 = vrot.slane %v985, 4
    %v987 = vadd.f32 %v985, %v986
    %v988 = vrot.slane %v987, 2
    %v989 = vadd.f32 %v987, %v988
    %v990 = vrot.slane %v989, 1
    %v991 = vadd.f32 %v989, %v990
    %v992 = vadd.f32 %v788, %v792
    %v993 = vadd.f32 %v992, %v796
    %v994 = vadd.f32 %v993, %v800
    %v995 = vrot.slane %v994, 4
    %v996 = vadd.f32 %v994, %v995
    %v997 = vrot.slane %v996, 2
    %v998 = vadd.f32 %v996, %v997
    %v999 = vrot.slane %v998, 1
    %v1000 = vadd.f32 %v998, %v999
    %v1001 = vadd.f32 %v789, %v793
    %v1002 = vadd.f32 %v1001, %v797
    %v1003 = vadd.f32 %v1002, %v801
    %v1004 = vrot.slane %v1003, 4
    %v1005 = vadd.f32 %v1003, %v1004
    %v1006 = vrot.slane %v1005, 2
    %v1007 = vadd.f32 %v1005, %v1006
    %v1008 = vrot.slane %v1007, 1
    %v1009 = vadd.f32 %v1007, %v1008
    %v1010 = vadd.f32 %v802, %v806
    %v1011 = vadd.f32 %v1010, %v810
    %v1012 = vadd.f32 %v1011, %v814
    %v1013 = vrot.slane %v1012, 4
    %v1014 = vadd.f32 %v1012, %v1013
    %v1015 = vrot.slane %v1014, 2
    %v1016 = vadd.f32 %v1014, %v1015
    %v1017 = vrot.slane %v1016, 1
    %v1018 = vadd.f32 %v1016, %v1017
    %v1019 = vadd.f32 %v803, %v807
    %v1020 = vadd.f32 %v1019, %v811
    %v1021 = vadd.f32 %v1020, %v815
    %v1022 = vrot.slane %v1021, 4
    %v1023 = vadd.f32 %v1021, %v1022
    %v1024 = vrot.slane %v1023, 2
    %v1025 = vadd.f32 %v1023, %v1024
    %v1026 = vrot.slane %v1025, 1
    %v1027 = vadd.f32 %v1025, %v1026
    %v1028 = vadd.f32 %v804, %v808
    %v1029 = vadd.f32 %v1028, %v812
    %v1030 = vadd.f32 %v1029, %v816
    %v1031 = vrot.slane %v1030, 4
    %v1032 = vadd.f32 %v1030, %v1031
    %v1033 = vrot.slane %v1032, 2
    %v1034 = vadd.f32 %v1032, %v1033
    %v1035 = vrot.slane %v1034, 1
    %v1036 = vadd.f32 %v1034, %v1035
    %v1037 = vadd.f32 %v805, %v809
    %v1038 = vadd.f32 %v1037, %v813
    %v1039 = vadd.f32 %v1038, %v817
    %v1040 = vrot.slane %v1039, 4
    %v1041 = vadd.f32 %v1039, %v1040
    %v1042 = vrot.slane %v1041, 2
    %v1043 = vadd.f32 %v1041, %v1042
    %v1044 = vrot.slane %v1043, 1
    %v1045 = vadd.f32 %v1043, %v1044
    %v1046 = vadd.f32 %v818, %v822
    %v1047 = vadd.f32 %v1046, %v826
    %v1048 = vadd.f32 %v1047, %v830
    %v1049 = vrot.slane %v1048, 4
    %v1050 = vadd.f32 %v1048, %v1049
    %v1051 = vrot.slane %v1050, 2
    %v1052 = vadd.f32 %v1050, %v1051
    %v1053 = vrot.slane %v1052, 1
    %v1054 = vadd.f32 %v1052, %v1053
    %v1055 = vadd.f32 %v819, %v823
    %v1056 = vadd.f32 %v1055, %v827
    %v1057 = vadd.f32 %v1056, %v831
    %v1058 = vrot.slane %v1057, 4
    %v1059 = vadd.f32 %v1057, %v1058
    %v1060 = vrot.slane %v1059, 2
    %v1061 = vadd.f32 %v1059, %v1060
    %v1062 = vrot.slane %v1061, 1
    %v1063 = vadd.f32 %v1061, %v1062
    %v1064 = vadd.f32 %v820, %v824
    %v1065 = vadd.f32 %v1064, %v828
    %v1066 = vadd.f32 %v1065, %v832
    %v1067 = vrot.slane %v1066, 4
    %v1068 = vadd.f32 %v1066, %v1067
    %v1069 = vrot.slane %v1068, 2
    %v1070 = vadd.f32 %v1068, %v1069
    %v1071 = vrot.slane %v1070, 1
    %v1072 = vadd.f32 %v1070, %v1071
    %v1073 = vadd.f32 %v821, %v825
    %v1074 = vadd.f32 %v1073, %v829
    %v1075 = vadd.f32 %v1074, %v833
    %v1076 = vrot.slane %v1075, 4
    %v1077 = vadd.f32 %v1075, %v1076
    %v1078 = vrot.slane %v1077, 2
    %v1079 = vadd.f32 %v1077, %v1078
    %v1080 = vrot.slane %v1079, 1
    %v1081 = vadd.f32 %v1079, %v1080
    %v1082 = vadd.f32 %v834, %v838
    %v1083 = vadd.f32 %v1082, %v842
    %v1084 = vadd.f32 %v1083, %v846
    %v1085 = vrot.slane %v1084, 4
    %v1086 = vadd.f32 %v1084, %v1085
    %v1087 = vrot.slane %v1086, 2
    %v1088 = vadd.f32 %v1086, %v1087
    %v1089 = vrot.slane %v1088, 1
    %v1090 = vadd.f32 %v1088, %v1089
    %v1091 = vadd.f32 %v835, %v839
    %v1092 = vadd.f32 %v1091, %v843
    %v1093 = vadd.f32 %v1092, %v847
    %v1094 = vrot.slane %v1093, 4
    %v1095 = vadd.f32 %v1093, %v1094
    %v1096 = vrot.slane %v1095, 2
    %v1097 = vadd.f32 %v1095, %v1096
    %v1098 = vrot.slane %v1097, 1
    %v1099 = vadd.f32 %v1097, %v1098
    %v1100 = vadd.f32 %v836, %v840
    %v1101 = vadd.f32 %v1100, %v844
    %v1102 = vadd.f32 %v1101, %v848
    %v1103 = vrot.slane %v1102, 4
    %v1104 = vadd.f32 %v1102, %v1103
    %v1105 = vrot.slane %v1104, 2
    %v1106 = vadd.f32 %v1104, %v1105
    %v1107 = vrot.slane %v1106, 1
    %v1108 = vadd.f32 %v1106, %v1107
    %v1109 = vadd.f32 %v837, %v841
    %v1110 = vadd.f32 %v1109, %v845
    %v1111 = vadd.f32 %v1110, %v849
    %v1112 = vrot.slane %v1111, 4
    %v1113 = vadd.f32 %v1111, %v1112
    %v1114 = vrot.slane %v1113, 2
    %v1115 = vadd.f32 %v1113, %v1114
    %v1116 = vrot.slane %v1115, 1
    %v1117 = vadd.f32 %v1115, %v1116
    %v1118 = vadd.f32 %v850, %v854
    %v1119 = vadd.f32 %v1118, %v858
    %v1120 = vadd.f32 %v1119, %v862
    %v1121 = vrot.slane %v1120, 4
    %v1122 = vadd.f32 %v1120, %v1121
    %v1123 = vrot.slane %v1122, 2
    %v1124 = vadd.f32 %v1122, %v1123
    %v1125 = vrot.slane %v1124, 1
    %v1126 = vadd.f32 %v1124, %v1125
    %v1127 = vadd.f32 %v851, %v855
    %v1128 = vadd.f32 %v1127, %v859
    %v1129 = vadd.f32 %v1128, %v863
    %v1130 = vrot.slane %v1129, 4
    %v1131 = vadd.f32 %v1129, %v1130
    %v1132 = vrot.slane %v1131, 2
    %v1133 = vadd.f32 %v1131, %v1132
    %v1134 = vrot.slane %v1133, 1
    %v1135 = vadd.f32 %v1133, %v1134
    %v1136 = vadd.f32 %v852, %v856
    %v1137 = vadd.f32 %v1136, %v860
    %v1138 = vadd.f32 %v1137, %v864
    %v1139 = vrot.slane %v1138, 4
    %v1140 = vadd.f32 %v1138, %v1139
    %v1141 = vrot.slane %v1140, 2
    %v1142 = vadd.f32 %v1140, %v1141
    %v1143 = vrot.slane %v1142, 1
    %v1144 = vadd.f32 %v1142, %v1143
    %v1145 = vadd.f32 %v853, %v857
    %v1146 = vadd.f32 %v1145, %v861
    %v1147 = vadd.f32 %v1146, %v865
    %v1148 = vrot.slane %v1147, 4
    %v1149 = vadd.f32 %v1147, %v1148
    %v1150 = vrot.slane %v1149, 2
    %v1151 = vadd.f32 %v1149, %v1150
    %v1152 = vrot.slane %v1151, 1
    %v1153 = vadd.f32 %v1151, %v1152
    %v1154 = vld [vmem:[%s1] sm:$0xff]
    %v1155 = vld [vmem:[%s1 + $0x8] sm:$0xff]
    %v1156 = vld [vmem:[%s1 + $0x10] sm:$0xff]
    %v1157 = vld [vmem:[%s1 + $0x18] sm:$0xff]
    %v1158 = vld [vmem:[%s1 + $0x20] sm:$0xff]
    %v1159 = vld [vmem:[%s1 + $0x28] sm:$0xff]
    %v1160 = vld [vmem:[%s1 + $0x30] sm:$0xff]
    %v1161 = vld [vmem:[%s1 + $0x38] sm:$0xff]
    %v1162 = vld [vmem:[%s2] sm:$0xff]
    %v1163 = vld [vmem:[%s2 + $0x8] sm:$0xff]
    %vm1196 = vcmask 1041409
    %v1197 = vsel %vm1196, %v474, %v438
    %vm1198 = vcmask 1042434
    %v1199 = vsel %vm1198, %v510, %v1197
    %vm1200 = vcmask 1043459
    %v1201 = vsel %vm1200, %v546, %v1199
    %vm1202 = vcmask 1044484
    %v1203 = vsel %vm1202, %v582, %v1201
    %vm1204 = vcmask 1045509
    %v1205 = vsel %vm1204, %v618, %v1203
    %vm1206 = vcmask 1046534
    %v1207 = vsel %vm1206, %v654, %v1205
    %vm1208 = vcmask 1047559
    %v1209 = vsel %vm1208, %v690, %v1207
    %v1210 = vsel %vm1196, %v483, %v447
    %v1211 = vsel %vm1198, %v519, %v1210
    %v1212 = vsel %vm1200, %v555, %v1211
    %v1213 = vsel %vm1202, %v591, %v1212
    %v1214 = vsel %vm1204, %v627, %v1213
    %v1215 = vsel %vm1206, %v663, %v1214
    %v1216 = vsel %vm1208, %v699, %v1215
    %v1217 = vsel %vm1196, %v492, %v456
    %v1218 = vsel %vm1198, %v528, %v1217
    %v1219 = vsel %vm1200, %v564, %v1218
    %v1220 = vsel %vm1202, %v600, %v1219
    %v1221 = vsel %vm1204, %v636, %v1220
    %v1222 = vsel %vm1206, %v672, %v1221
    %v1223 = vsel %vm1208, %v708, %v1222
    %v1224 = vsel %vm1196, %v501, %v465
    %v1225 = vsel %vm1198, %v537, %v1224
    %v1226 = vsel %vm1200, %v573, %v1225
    %v1227 = vsel %vm1202, %v609, %v1226
    %v1228 = vsel %vm1204, %v645, %v1227
    %v1229 = vsel %vm1206, %v681, %v1228
    %v1230 = vsel %vm1208, %v717, %v1229
    %v1235 = vsub.f32 %v1154, %v1209
    %v1236 = vsub.f32 %v1155, %v1216
    %v1237 = vsub.f32 %v1156, %v1223
    %v1238 = vsub.f32 %v1157, %v1230
    %1240 = vset.pattern.permute.xlu0 0
    %1241 = vperm.xlu0 %1240, %v1162
    %v1242 = vpop.permute.xlu0 %1241
    %v1244 = vmul.f32 %v1235, %v1242
    %v1245 = vmul.f32 %v1236, %v1242
    %v1246 = vmul.f32 %v1237, %v1242
    %v1247 = vmul.f32 %v1238, %v1242
    %v1280 = vsel %vm1196, %v910, %v874
    %v1281 = vsel %vm1198, %v946, %v1280
    %v1282 = vsel %vm1200, %v982, %v1281
    %v1283 = vsel %vm1202, %v1018, %v1282
    %v1284 = vsel %vm1204, %v1054, %v1283
    %v1285 = vsel %vm1206, %v1090, %v1284
    %v1286 = vsel %vm1208, %v1126, %v1285
    %v1287 = vsel %vm1196, %v919, %v883
    %v1288 = vsel %vm1198, %v955, %v1287
    %v1289 = vsel %vm1200, %v991, %v1288
    %v1290 = vsel %vm1202, %v1027, %v1289
    %v1291 = vsel %vm1204, %v1063, %v1290
    %v1292 = vsel %vm1206, %v1099, %v1291
    %v1293 = vsel %vm1208, %v1135, %v1292
    %v1294 = vsel %vm1196, %v928, %v892
    %v1295 = vsel %vm1198, %v964, %v1294
    %v1296 = vsel %vm1200, %v1000, %v1295
    %v1297 = vsel %vm1202, %v1036, %v1296
    %v1298 = vsel %vm1204, %v1072, %v1297
    %v1299 = vsel %vm1206, %v1108, %v1298
    %v1300 = vsel %vm1208, %v1144, %v1299
    %v1301 = vsel %vm1196, %v937, %v901
    %v1302 = vsel %vm1198, %v973, %v1301
    %v1303 = vsel %vm1200, %v1009, %v1302
    %v1304 = vsel %vm1202, %v1045, %v1303
    %v1305 = vsel %vm1204, %v1081, %v1304
    %v1306 = vsel %vm1206, %v1117, %v1305
    %v1307 = vsel %vm1208, %v1153, %v1306
    %v1312 = vsub.f32 %v1158, %v1286
    %v1313 = vsub.f32 %v1159, %v1293
    %v1314 = vsub.f32 %v1160, %v1300
    %v1315 = vsub.f32 %v1161, %v1307
    %1317 = vset.pattern.permute.xlu0 0
    %1318 = vperm.xlu0 %1317, %v1163
    %v1319 = vpop.permute.xlu0 %1318
    %v1321 = vmul.f32 %v1312, %v1319
    %v1322 = vmul.f32 %v1313, %v1319
    %v1323 = vmul.f32 %v1314, %v1319
    %v1324 = vmul.f32 %v1315, %v1319
    %v1325 = vmul.f32 %v1244, %v1244
    %v1326 = vmul.f32 %v1245, %v1245
    %v1327 = vmul.f32 %v1246, %v1246
    %v1328 = vmul.f32 %v1247, %v1247
    %v1329 = vmul.f32 %v1321, %v1321
    %v1330 = vmul.f32 %v1322, %v1322
    %v1331 = vmul.f32 %v1323, %v1323
    %v1332 = vmul.f32 %v1324, %v1324
    %v1333 = vadd.f32 %v1325, %v1329
    %v1334 = vadd.f32 %v1326, %v1330
    %v1335 = vadd.f32 %v1327, %v1331
    %v1336 = vadd.f32 %v1328, %v1332
    %v1337 = vrot.slane %v1333, 4
    %v1338 = vadd.f32 %v1333, %v1337
    %v1339 = vrot.slane %v1338, 2
    %v1340 = vadd.f32 %v1338, %v1339
    %v1341 = vrot.slane %v1340, 1
    %v1342 = vadd.f32 %v1340, %v1341
    %v1343 = vrot.slane %v1334, 4
    %v1344 = vadd.f32 %v1334, %v1343
    %v1345 = vrot.slane %v1344, 2
    %v1346 = vadd.f32 %v1344, %v1345
    %v1347 = vrot.slane %v1346, 1
    %v1348 = vadd.f32 %v1346, %v1347
    %v1349 = vrot.slane %v1335, 4
    %v1350 = vadd.f32 %v1335, %v1349
    %v1351 = vrot.slane %v1350, 2
    %v1352 = vadd.f32 %v1350, %v1351
    %v1353 = vrot.slane %v1352, 1
    %v1354 = vadd.f32 %v1352, %v1353
    %v1355 = vrot.slane %v1336, 4
    %v1356 = vadd.f32 %v1336, %v1355
    %v1357 = vrot.slane %v1356, 2
    %v1358 = vadd.f32 %v1356, %v1357
    %v1359 = vrot.slane %v1358, 1
    %v1360 = vadd.f32 %v1358, %v1359
    %v1365 = vrot.slane %v1348, 7
    %v1366 = vrot.slane %v1354, 6
    %v1367 = vrot.slane %v1360, 5
    %vm1368 = vcmask 1040384
    %v1369 = vsel %vm1368, %v1342, %v1365
    %v1370 = vsel %vm1198, %v1366, %v1367
    %vm1371 = vcmask 1041408
    %v1372 = vsel %vm1371, %v1369, %v1370
    %v1374 = vlaneseq
    %vm1375 = vcmp.ge.s32.totalorder %v1374, 0
    %vm1376 = vcmp.lt.s32.totalorder %v1374, 512
    %vm1377 = vmand %vm1375, %vm1376
    %1378 = vst.msk [vmem:[#allocation2] sm:$0xf] %vm1377, %v1372
    // Predicated region
    $region18: #{csdi_forward_batched.1} parent=1 // pred_check
      _
    $region19: #{csdi_forward_batched.1} parent=1 // pred_check_branch
      %1380 = sbr.rel (0) target = $region21
    $region20: #{csdi_forward_batched.1} parent=1 // pred_region
      %1382 = vsyncadd [#allocation3], 0
      %s1384 = sshll.u32 [#allocation2], 4
      %s1385 = int_to_ptr.vmem [resolvable:$true] %s1384
      %s1386 = sshll.u32 %s4, 4
      %s1387 = int_to_ptr.hbm [resolvable:$true] %s1386
      %1389 = dma.vmem_to_hbm [thread:$0]  %s1385, 64, %s1387, [#allocation3]
    $region21: #{csdi_forward_batched.1} parent=1 // pred_fallthru
      _
    // Predicated region
    $region22: #{csdi_forward_batched.1} parent=1 // pred_check
      _
    $region23: #{csdi_forward_batched.1} parent=1 // pred_check_branch
      %1391 = sbr.rel (0) target = $region25
    $region24: #{csdi_forward_batched.1} parent=1 // pred_region
      %1393 = dma.done [#allocation3], 64
    $region25: #{csdi_forward_batched.1} parent=1 // pred_fallthru
      _
    %1394 = vsyncpa [#allocation3], 1

</llo_original>
